<compile_context>
chip_gen: v5e
topology: v5e:2x2
jax: 0.10.0
libtpu: 0.0.40
codegen_flags: <defaults>
</compile_context>

<pallas_src>
import jax
import jax.numpy as jnp
from jax.experimental import pallas as pl
from jax.experimental.pallas import tpu as pltpu


NEG_SLOPE = 0.01  # F.leaky_relu default


def _leaky_relu(x):
    return jnp.where(x > 0, x, NEG_SLOPE * x)


def _round_up(x, n):
    return ((x + n - 1) // n) * n


def vis_transformer_kernel(x_ref, w1_ref, b1_ref, w2_ref, b2_ref, o_ref):
    # x_ref:  (TM, D_in)     row tile of the flattened input (unpadded lanes)
    # w1_ref: (D_in, H_p)    in_layer weight, pre-transposed, hidden lane-padded
    # b1_ref: (1, H_p)       f32
    # w2_ref: (H_p, D_out)   out_layer weight, pre-transposed
    # b2_ref: (1, D_out)     f32
    # o_ref:  (TM, D_out)
    x = x_ref[...].astype(w1_ref.dtype)   # no-op for f32; bf16 if compute_dtype

    # in_layer + leaky_relu (dropout p=0.0 is the identity).  f32 MXU accum;
    # bias added once to the f32 accumulator.
    h = jnp.dot(x, w1_ref[...], preferred_element_type=jnp.float32)
    h = _leaky_relu(h + b1_ref[...])

    # out_layer + leaky_relu.  Cast intermediate to the weight/compute dtype
    # before the second matmul (no-op for the pure-f32 path).
    y = jnp.dot(h.astype(w2_ref.dtype), w2_ref[...],
                preferred_element_type=jnp.float32)
    y = _leaky_relu(y + b2_ref[...])

    o_ref[...] = y.astype(o_ref.dtype)


def prepare_vis_transformer_params(w1, b1, w2, b2, *, compute_dtype=None):
    """One-time (model-init) packing of the Linear params -- hoisted out of the
    per-forward path so no weight copies are re-materialized per call.

    w1: (d_in, hidden), b1: (hidden,), w2: (hidden, d_out), b2: (d_out,)
    (weights already pre-transposed from nn.Linear's (out, in) layout).
    compute_dtype: e.g. jnp.bfloat16 to run the MXU in bf16 (explicit numerics
    decision); accumulation stays f32 either way.  Biases stay f32.
    """
    d_in, hidden = w1.shape
    d_out = w2.shape[1]
    h_p = _round_up(hidden, 128)          # lane-dense hidden dim (done once)
    wdt = jnp.dtype(compute_dtype) if compute_dtype is not None else w1.dtype

    w1p = jnp.zeros((d_in, h_p), wdt).at[:, :hidden].set(w1.astype(wdt))
    b1p = jnp.zeros((1, h_p), jnp.float32).at[0, :hidden].set(
        b1.reshape(-1).astype(jnp.float32))
    w2p = jnp.zeros((h_p, d_out), wdt).at[:hidden, :].set(w2.astype(wdt))
    b2p = b2.reshape(1, d_out).astype(jnp.float32)
    return w1p, b1p, w2p, b2p


def _vmem_capacity_bytes():
    try:
        return int(pltpu.get_tpu_info().vmem_capacity_bytes)
    except Exception:
        return 64 * 1024 * 1024   # conservative: v7x per-TensorCore VMEM


def vis_transformer(x, params, *, tm_max=1024):
    """x: (..., d_in); params from prepare_vis_transformer_params.
    Returns (..., d_out)."""
    w1p, b1p, w2p, b2p = params
    orig_shape = x.shape
    d_in = orig_shape[-1]
    assert w1p.shape[0] == d_in, "weight/input feature mismatch"
    h_p = w1p.shape[1]
    d_out = w2p.shape[1]

    x2d = x.reshape(-1, d_in)             # metadata-only, no HBM copy
    m = x2d.shape[0]
    dt = x2d.dtype
    itemsize = dt.itemsize

    # Sublane packing of the activation dtype: 8 rows (f32), 16 (bf16), 32 (i8).
    packing = 8 * max(1, 4 // itemsize)

    # --- generation-aware VMEM budget ------------------------------------
    budget = int(_vmem_capacity_bytes() * 0.75)  # headroom for Mosaic scratch

    w_itemsize = w1p.dtype.itemsize
    weight_bytes = ((w1p.size + w2p.size) * w_itemsize
                    + (b1p.size + b2p.size) * b1p.dtype.itemsize)
    # Single-buffer the grid-invariant weights once double-buffering them would
    # take a big bite out of VMEM (ViT scale / v7x).  The constant index_map
    # already means they are DMA'd only once either way.
    single_buffer_weights = 2 * weight_bytes > budget // 2
    wbuf = 1 if single_buffer_weights else 2

    # Rough per-row VMEM: double-buffered x/out tiles + f32 intermediates.
    per_row = ((2 * d_in + 2 * d_out) * itemsize
               + 4 * (d_in + 2 * h_p + 2 * d_out))
    avail = max(budget - wbuf * weight_bytes, per_row * packing)
    tm_cap = min(tm_max, int(avail * 0.85) // per_row)
    tm_cap = max(packing, (tm_cap // packing) * packing)

    tm = min(tm_cap, _round_up(m, packing))
    # With >= a few hundred rows, keep >= 2 grid steps so the "parallel" row
    # axis can be sharded across both v7x TensorCores (no effect on v5e/v6e).
    if m >= 512:
        tm = min(tm, _round_up(-(-m // 2), packing))
    grid = (pl.cdiv(m, tm),)

    vmem_limit = int(min(budget,
                         wbuf * weight_bytes + tm * per_row + (16 << 20)))

    def _weight_spec(shape):
        imap = lambda i: (0, 0)          # grid-invariant: DMA'd once
        if single_buffer_weights:
            return pl.BlockSpec(shape, imap, pipeline_mode=pl.Buffered(1))
        return pl.BlockSpec(shape, imap)

    # Advisory cost estimate for the XLA scheduler.
    flops = 2 * m * (d_in * h_p + h_p * d_out)
    bytes_accessed = int(x2d.size * itemsize + weight_bytes
                         + m * d_out * itemsize)
    cost = pl.CostEstimate(flops=flops, transcendentals=0,
                           bytes_accessed=bytes_accessed)

    out2d = pl.pallas_call(
        vis_transformer_kernel,
        out_shape=jax.ShapeDtypeStruct((m, d_out), dt),
        grid_spec=pltpu.PrefetchScalarGridSpec(
            num_scalar_prefetch=0,
            grid=grid,
            in_specs=[
                # Row tile of x; last dim == full array dim, so no lane padding
                # and no zero-pad copy of the activation are needed.  The
                # partial last row tile is masked by Pallas on writeback.
                pl.BlockSpec((tm, d_in), lambda i: (i, 0)),
                _weight_spec((d_in, h_p)),
                _weight_spec((1, h_p)),
                _weight_spec((h_p, d_out)),
                _weight_spec((1, d_out)),
            ],
            # Output written directly at (m, d_out): no post-slice copy.
            out_specs=pl.BlockSpec((tm, d_out), lambda i: (i, 0)),
        ),
        compiler_params=pltpu.CompilerParams(
            dimension_semantics=("parallel",),   # row tiles shard across cores
            vmem_limit_bytes=vmem_limit,
        ),
        cost_estimate=cost,
    )(x2d, w1p, b1p, w2p, b2p)

    return out2d.reshape(*orig_shape[:-1], d_out)


def _torch_style_linear_init(key, out_features, in_features, dtype=jnp.float32):
    """Deterministic init matching nn.Linear's U(-1/sqrt(fan_in), 1/sqrt(fan_in))."""
    kw, kb = jax.random.split(key)
    bound = 1.0 / jnp.sqrt(jnp.asarray(in_features, dtype))
    w = jax.random.uniform(kw, (out_features, in_features), dtype,
                           minval=-bound, maxval=bound)
    b = jax.random.uniform(kb, (out_features,), dtype,
                           minval=-bound, maxval=bound)
    return w, b


def _reference(x2d, w1, b1, w2, b2):
    h = _leaky_relu(x2d @ w1 + b1)
    return _leaky_relu(h @ w2 + b2)


if __name__ == "__main__":
    # Small shapes consistent with the module's forward.  Dims are chosen NOT
    # to be multiples of 8/128 and m is not a multiple of the row tile, so the
    # full-extent-lane / partial-tile / padding paths are all exercised.
    batch, seq = 2, 7
    input_dim, hidden_units, output_dim = 96, 160, 80

    key = jax.random.PRNGKey(0)
    kx, k1, k2 = jax.random.split(key, 3)

    x = jax.random.normal(kx, (batch, seq, input_dim), jnp.float32)

    w1_pt, b1 = _torch_style_linear_init(k1, hidden_units, input_dim)   # (H, D_in)
    w2_pt, b2 = _torch_style_linear_init(k2, output_dim, hidden_units)  # (D_out, H)
    w1, w2 = w1_pt.T, w2_pt.T                     # pre-transpose to (in, out)

    # One-time "model init": pad/pack the weights (hoisted out of the forward).
    params = prepare_vis_transformer_params(w1, b1, w2, b2)

    out = vis_transformer(x, params)
    out = jax.block_until_ready(out)

    ref = _reference(x.reshape(-1, input_dim), w1, b1, w2, b2).reshape(
        batch, seq, output_dim)
    assert out.shape == (batch, seq, output_dim)
    assert jnp.allclose(out, ref, atol=1e-5, rtol=1e-5)

    print("KERNEL_OK")
</pallas_src>

<mosaic_0001>
module attributes {stable_mosaic.version = 11 : i64} {
  func.func @vis_transformer_kernel(%arg0: i32, %arg1: memref<16x96xf32, #tpu.memory_space<vmem>>, %arg2: memref<96x256xf32, #tpu.memory_space<vmem>>, %arg3: memref<1x256xf32, #tpu.memory_space<vmem>>, %arg4: memref<256x80xf32, #tpu.memory_space<vmem>>, %arg5: memref<1x80xf32, #tpu.memory_space<vmem>>, %arg6: memref<16x80xf32, #tpu.memory_space<vmem>>) attributes {dimension_semantics = [#tpu.dimension_semantics<parallel>], iteration_bounds = array<i64: 1>, scalar_prefetch = 0 : i64, scratch_operands = 0 : i64, tpu.core_type = #tpu.core_type<tc>, window_params = [{transform_indices = @transform_0, window_bounds = array<i64: 16, 96>}, {pipeline_mode = #tpu.pipeline_mode<synchronous>, transform_indices = @transform_1, window_bounds = array<i64: 96, 256>}, {pipeline_mode = #tpu.pipeline_mode<synchronous>, transform_indices = @transform_2, window_bounds = array<i64: 1, 256>}, {pipeline_mode = #tpu.pipeline_mode<synchronous>, transform_indices = @transform_3, window_bounds = array<i64: 256, 80>}, {pipeline_mode = #tpu.pipeline_mode<synchronous>, transform_indices = @transform_4, window_bounds = array<i64: 1, 80>}, {transform_indices = @transform_5, window_bounds = array<i64: 16, 80>}]} {
    %c0 = arith.constant 0 : index
    %c0_0 = arith.constant 0 : index
    %0 = vector.load %arg1[%c0, %c0_0] : memref<16x96xf32, #tpu.memory_space<vmem>>, vector<16x96xf32>
    %c0_1 = arith.constant 0 : index
    %c0_2 = arith.constant 0 : index
    %1 = vector.load %arg2[%c0_1, %c0_2] : memref<96x256xf32, #tpu.memory_space<vmem>>, vector<96x256xf32>
    %cst = arith.constant dense<0.000000e+00> : vector<16x256xf32>
    %2 = tpu.matmul %0, %1, %cst {dimension_numbers = #tpu.dot_dimension_numbers<[1], [0], [0], [1], [0, 0, 1, 1], [], []>} : vector<16x96xf32>, vector<96x256xf32>, vector<16x256xf32> -> vector<16x256xf32>
    %c0_3 = arith.constant 0 : index
    %c0_4 = arith.constant 0 : index
    %3 = vector.load %arg3[%c0_3, %c0_4] : memref<1x256xf32, #tpu.memory_space<vmem>>, vector<1x256xf32>
    %4 = vector.broadcast %3 : vector<1x256xf32> to vector<16x256xf32>
    %5 = arith.addf %2, %4 : vector<16x256xf32>
    %cst_5 = arith.constant 0.000000e+00 : f32
    %6 = vector.broadcast %cst_5 : f32 to vector<16x256xf32>
    %7 = arith.cmpf ogt, %5, %6 : vector<16x256xf32>
    %cst_6 = arith.constant 0.00999999977 : f32
    %8 = vector.broadcast %cst_6 : f32 to vector<16x256xf32>
    %9 = arith.mulf %8, %5 : vector<16x256xf32>
    %10 = arith.select %7, %5, %9 : vector<16x256xi1>, vector<16x256xf32>
    %c0_7 = arith.constant 0 : index
    %c0_8 = arith.constant 0 : index
    %11 = vector.load %arg4[%c0_7, %c0_8] : memref<256x80xf32, #tpu.memory_space<vmem>>, vector<256x80xf32>
    %cst_9 = arith.constant dense<0.000000e+00> : vector<16x80xf32>
    %12 = tpu.matmul %10, %11, %cst_9 {dimension_numbers = #tpu.dot_dimension_numbers<[1], [0], [0], [1], [0, 0, 1, 1], [], []>} : vector<16x256xf32>, vector<256x80xf32>, vector<16x80xf32> -> vector<16x80xf32>
    %c0_10 = arith.constant 0 : index
    %c0_11 = arith.constant 0 : index
    %13 = vector.load %arg5[%c0_10, %c0_11] : memref<1x80xf32, #tpu.memory_space<vmem>>, vector<1x80xf32>
    %14 = vector.broadcast %13 : vector<1x80xf32> to vector<16x80xf32>
    %15 = arith.addf %12, %14 : vector<16x80xf32>
    %cst_12 = arith.constant 0.000000e+00 : f32
    %16 = vector.broadcast %cst_12 : f32 to vector<16x80xf32>
    %17 = arith.cmpf ogt, %15, %16 : vector<16x80xf32>
    %cst_13 = arith.constant 0.00999999977 : f32
    %18 = vector.broadcast %cst_13 : f32 to vector<16x80xf32>
    %19 = arith.mulf %18, %15 : vector<16x80xf32>
    %20 = arith.select %17, %15, %19 : vector<16x80xi1>, vector<16x80xf32>
    %c0_14 = arith.constant 0 : index
    %c0_15 = arith.constant 0 : index
    %21 = vector.load %arg6[%c0_14, %c0_15] : memref<16x80xf32, #tpu.memory_space<vmem>>, vector<16x80xf32>
    tpu.vector_store %arg6[%c0_14, %c0_15], %20 {strides = array<i32>} : memref<16x80xf32, #tpu.memory_space<vmem>>, vector<16x80xf32>,
    return
  }
  func.func @transform_0(%arg0: i32) -> (i32, i32) {
    %c0_i32 = arith.constant 0 : i32
    %c0_i32_0 = arith.constant 0 : i32
    return %arg0, %c0_i32 : i32, i32
  }
  func.func @transform_1(%arg0: i32) -> (i32, i32) {
    %c0_i32 = arith.constant 0 : i32
    %c0_i32_0 = arith.constant 0 : i32
    %c0_i32_1 = arith.constant 0 : i32
    return %c0_i32, %c0_i32_0 : i32, i32
  }
  func.func @transform_2(%arg0: i32) -> (i32, i32) {
    %c0_i32 = arith.constant 0 : i32
    %c0_i32_0 = arith.constant 0 : i32
    %c0_i32_1 = arith.constant 0 : i32
    return %c0_i32, %c0_i32_0 : i32, i32
  }
  func.func @transform_3(%arg0: i32) -> (i32, i32) {
    %c0_i32 = arith.constant 0 : i32
    %c0_i32_0 = arith.constant 0 : i32
    %c0_i32_1 = arith.constant 0 : i32
    return %c0_i32, %c0_i32_0 : i32, i32
  }
  func.func @transform_4(%arg0: i32) -> (i32, i32) {
    %c0_i32 = arith.constant 0 : i32
    %c0_i32_0 = arith.constant 0 : i32
    %c0_i32_1 = arith.constant 0 : i32
    return %c0_i32, %c0_i32_0 : i32, i32
  }
  func.func @transform_5(%arg0: i32) -> (i32, i32) {
    %c0_i32 = arith.constant 0 : i32
    %c0_i32_0 = arith.constant 0 : i32
    return %arg0, %c0_i32 : i32, i32
  }
}

</mosaic_0001>

<llo_original>
// kernel: tpu_custom_call.1
$region0: #{tpu_custom_call.1}
  #allocation0 [shape = 'u32[]', space=smem, size = 0x4, offset = 0x4, fixed_abs, tag = 'smem constant byte address 0x4 - core index']
  #allocation1 [shape = 'u32[72,128]{1,0:T(1,128)}', space=vmem, size = 0x9000, scoped, tag = 'internal scratch']
  %s0 = inlined_call_operand.vmem [shape: f32[14,96], index: 0, kind: input, shape index: {}]
  %s1 = inlined_call_operand.vmem [shape: f32[96,256], index: 1, kind: input, shape index: {}]
  %s2 = inlined_call_operand.vmem [shape: f32[1,256], index: 2, kind: input, shape index: {}]
  %s3 = inlined_call_operand.vmem [shape: f32[256,80], index: 3, kind: input, shape index: {}]
  %s4 = inlined_call_operand.vmem [shape: f32[1,80], index: 4, kind: input, shape index: {}]
  %s5 = inlined_call_operand.hbm [shape: f32[14,80], index: 5, kind: output, shape index: {}]
  %s6 = sld [smem:[#allocation0]]
  $region30: #{tpu_custom_call.1} parent=0
    _
  %s8 = ssub.s32 1, %s6
  %s9 = scalar_select 0, %s8, %s6
  $region1: #{tpu_custom_call.1} parent=0
    #allocation2 [shape = 'u8[8192]{0}', space=vmem, size = 0x2000, scoped, tag = 'output window, operand 0, single buffered']
    #allocation3 [shape = 's32[1]{0}', space=sflag, size = 0x4, scoped, tag = 'scoped memory for tpu_custom_call.1']
    %10 = vsyncpa [#allocation3], 0
    // Predicated region
    $region2: #{tpu_custom_call.1} parent=1 // pred_check
      _
    $region3: #{tpu_custom_call.1} parent=1 // pred_check_branch
      %12 = sbr.rel (0) target = $region5
    $region4: #{tpu_custom_call.1} parent=1 // pred_region
      _
    $region5: #{tpu_custom_call.1} parent=1 // pred_fallthru
      _
    // Predicated region
    $region6: #{tpu_custom_call.1} parent=1 // pred_check
      _
    $region7: #{tpu_custom_call.1} parent=1 // pred_check_branch
      %14 = sbr.rel (0) target = $region9
    $region8: #{tpu_custom_call.1} parent=1 // pred_region
      _
    $region9: #{tpu_custom_call.1} parent=1 // pred_fallthru
      _
    // Predicated region
    $region10: #{tpu_custom_call.1} parent=1 // pred_check
      _
    $region11: #{tpu_custom_call.1} parent=1 // pred_check_branch
      %16 = sbr.rel (0) target = $region13
    $region12: #{tpu_custom_call.1} parent=1 // pred_region
      _
    $region13: #{tpu_custom_call.1} parent=1 // pred_fallthru
      _
    // Predicated region
    $region14: #{tpu_custom_call.1} parent=1 // pred_check
      _
    $region15: #{tpu_custom_call.1} parent=1 // pred_check_branch
      %18 = sbr.rel (0) target = $region17
    $region16: #{tpu_custom_call.1} parent=1 // pred_region
      _
    $region17: #{tpu_custom_call.1} parent=1 // pred_fallthru
      _
    // Predicated region
    $region18: #{tpu_custom_call.1} parent=1 // pred_check
      _
    $region19: #{tpu_custom_call.1} parent=1 // pred_check_branch
      %20 = sbr.rel (0) target = $region21
    $region20: #{tpu_custom_call.1} parent=1 // pred_region
      _
    $region21: #{tpu_custom_call.1} parent=1 // pred_fallthru
      _
    %v21 = vld [vmem:[%s0] sm:$0xff]
    %v22 = vld [vmem:[%s0 + $0x8] sm:$0xff]
    %v23 = vld [vmem:[%s1] sm:$0xff]
    %v24 = vld [vmem:[%s1 + $0x8] sm:$0xff]
    %v25 = vld [vmem:[%s1 + $0x10] sm:$0xff]
    %v26 = vld [vmem:[%s1 + $0x18] sm:$0xff]
    %v27 = vld [vmem:[%s1 + $0x20] sm:$0xff]
    %v28 = vld [vmem:[%s1 + $0x28] sm:$0xff]
    %v29 = vld [vmem:[%s1 + $0x30] sm:$0xff]
    %v30 = vld [vmem:[%s1 + $0x38] sm:$0xff]
    %v31 = vld [vmem:[%s1 + $0x40] sm:$0xff]
    %v32 = vld [vmem:[%s1 + $0x48] sm:$0xff]
    %v33 = vld [vmem:[%s1 + $0x50] sm:$0xff]
    %v34 = vld [vmem:[%s1 + $0x58] sm:$0xff]
    %v35 = vld [vmem:[%s1 + $0x60] sm:$0xff]
    %v36 = vld [vmem:[%s1 + $0x68] sm:$0xff]
    %v37 = vld [vmem:[%s1 + $0x70] sm:$0xff]
    %v38 = vld [vmem:[%s1 + $0x78] sm:$0xff]
    %v39 = vld [vmem:[%s1 + $0x80] sm:$0xff]
    %v40 = vld [vmem:[%s1 + $0x88] sm:$0xff]
    %v41 = vld [vmem:[%s1 + $0x90] sm:$0xff]
    %v42 = vld [vmem:[%s1 + $0x98] sm:$0xff]
    %v43 = vld [vmem:[%s1 + $0xa0] sm:$0xff]
    %v44 = vld [vmem:[%s1 + $0xa8] sm:$0xff]
    %v45 = vld [vmem:[%s1 + $0xb0] sm:$0xff]
    %v46 = vld [vmem:[%s1 + $0xb8] sm:$0xff]
    %v47 = vld [vmem:[%s2] sm:$0x3]
    %v49 = vperm.slane %v47, 0
    %v50 = vperm.slane %v47, 1
    %vm53 = vcmask 785408
    %v55 = vsel %vm53, %v21, 0
    %v58 = vsel %vm53, %v22, 0
    %60 = vmatpush.msra.mxu0 0.0
    %61 = vmatpush.msra.mxu0 0.0
    %62 = vmatpush.msra.mxu0 0.0
    %63 = vmatpush.msra.mxu0 0.0
    %64 = vmatpush.msra.mxu0 %v45
    %65 = vmatpush.msra.mxu0 %v43
    %66 = vmatpush.msra.mxu0 %v41
    %67 = vmatpush.msra.mxu0 %v39
    %68 = vmatpush.msra.mxu0 %v37
    %69 = vmatpush.msra.mxu0 %v35
    %70 = vmatpush.msra.mxu0 %v33
    %71 = vmatpush.msra.mxu0 %v31
    %72 = vmatpush.msra.mxu0 %v29
    %73 = vmatpush.msra.mxu0 %v27
    %74 = vmatpush.msra.mxu0 %v25
    %75 = vmatpush.msra.mxu0 %v23
    %76 = vmatmul.f32.gmra.mxu0 %v55
    %v77 = vpop.f32.mrf.mxu0
    %v78 = vadd.f32 %v49, %v77
    %79 = vmatmul.f32.gmra.mxu0 %v58
    %v80 = vpop.f32.mrf.mxu0
    %v81 = vadd.f32 %v49, %v80
    %82 = vdwg.mxu0
    %83 = vmatpush.msra.mxu0 0.0
    %84 = vmatpush.msra.mxu0 0.0
    %85 = vmatpush.msra.mxu0 0.0
    %86 = vmatpush.msra.mxu0 0.0
    %87 = vmatpush.msra.mxu0 %v46
    %88 = vmatpush.msra.mxu0 %v44
    %89 = vmatpush.msra.mxu0 %v42
    %90 = vmatpush.msra.mxu0 %v40
    %91 = vmatpush.msra.mxu0 %v38
    %92 = vmatpush.msra.mxu0 %v36
    %93 = vmatpush.msra.mxu0 %v34
    %94 = vmatpush.msra.mxu0 %v32
    %95 = vmatpush.msra.mxu0 %v30
    %96 = vmatpush.msra.mxu0 %v28
    %97 = vmatpush.msra.mxu0 %v26
    %98 = vmatpush.msra.mxu0 %v24
    %99 = vmatmul.f32.gmra.mxu0 %v55
    %v100 = vpop.f32.mrf.mxu0
    %v101 = vadd.f32 %v50, %v100
    %102 = vmatmul.f32.gmra.mxu0 %v58
    %v103 = vpop.f32.mrf.mxu0
    %v104 = vadd.f32 %v50, %v103
    %105 = vdwg.mxu0
    %vm106 = vcmp.gt.f32.partialorder %v78, 0.0
    %vm107 = vcmp.gt.f32.partialorder %v101, 0.0
    %vm108 = vcmp.gt.f32.partialorder %v81, 0.0
    %vm109 = vcmp.gt.f32.partialorder %v104, 0.0
    %v110 = vmul.f32 %v78, 0.01
    %v111 = vmul.f32 %v101, 0.01
    %v112 = vmul.f32 %v81, 0.01
    %v113 = vmul.f32 %v104, 0.01
    %v114 = vsel %vm106, %v78, %v110
    %v115 = vsel %vm107, %v101, %v111
    %v116 = vsel %vm108, %v81, %v112
    %v117 = vsel %vm109, %v104, %v113
    %v118 = vld [vmem:[%s3] sm:$0xff]
    %v119 = vld [vmem:[%s3 + $0x8] sm:$0xff]
    %v120 = vld [vmem:[%s3 + $0x10] sm:$0xff]
    %v121 = vld [vmem:[%s3 + $0x18] sm:$0xff]
    %v122 = vld [vmem:[%s3 + $0x20] sm:$0xff]
    %v123 = vld [vmem:[%s3 + $0x28] sm:$0xff]
    %v124 = vld [vmem:[%s3 + $0x30] sm:$0xff]
    %v125 = vld [vmem:[%s3 + $0x38] sm:$0xff]
    %v126 = vld [vmem:[%s3 + $0x40] sm:$0xff]
    %v127 = vld [vmem:[%s3 + $0x48] sm:$0xff]
    %v128 = vld [vmem:[%s3 + $0x50] sm:$0xff]
    %v129 = vld [vmem:[%s3 + $0x58] sm:$0xff]
    %v130 = vld [vmem:[%s3 + $0x60] sm:$0xff]
    %v131 = vld [vmem:[%s3 + $0x68] sm:$0xff]
    %v132 = vld [vmem:[%s3 + $0x70] sm:$0xff]
    %v133 = vld [vmem:[%s3 + $0x78] sm:$0xff]
    %v134 = vld [vmem:[%s3 + $0x80] sm:$0xff]
    %v135 = vld [vmem:[%s3 + $0x88] sm:$0xff]
    %v136 = vld [vmem:[%s3 + $0x90] sm:$0xff]
    %v137 = vld [vmem:[%s3 + $0x98] sm:$0xff]
    %v138 = vld [vmem:[%s3 + $0xa0] sm:$0xff]
    %v139 = vld [vmem:[%s3 + $0xa8] sm:$0xff]
    %v140 = vld [vmem:[%s3 + $0xb0] sm:$0xff]
    %v141 = vld [vmem:[%s3 + $0xb8] sm:$0xff]
    %v142 = vld [vmem:[%s3 + $0xc0] sm:$0xff]
    %v143 = vld [vmem:[%s3 + $0xc8] sm:$0xff]
    %v144 = vld [vmem:[%s3 + $0xd0] sm:$0xff]
    %v145 = vld [vmem:[%s3 + $0xd8] sm:$0xff]
    %v146 = vld [vmem:[%s3 + $0xe0] sm:$0xff]
    %v147 = vld [vmem:[%s3 + $0xe8] sm:$0xff]
    %v148 = vld [vmem:[%s3 + $0xf0] sm:$0xff]
    %v149 = vld [vmem:[%s3 + $0xf8] sm:$0xff]
    %v150 = vld [vmem:[%s4] sm:$0x1]
    %v152 = vperm.slane %v150, 0
    %154 = vmatpush.msra.mxu0 %v133
    %155 = vmatpush.msra.mxu0 %v132
    %156 = vmatpush.msra.mxu0 %v131
    %157 = vmatpush.msra.mxu0 %v130
    %158 = vmatpush.msra.mxu0 %v129
    %159 = vmatpush.msra.mxu0 %v128
    %160 = vmatpush.msra.mxu0 %v127
    %161 = vmatpush.msra.mxu0 %v126
    %162 = vmatpush.msra.mxu0 %v125
    %163 = vmatpush.msra.mxu0 %v124
    %164 = vmatpush.msra.mxu0 %v123
    %165 = vmatpush.msra.mxu0 %v122
    %166 = vmatpush.msra.mxu0 %v121
    %167 = vmatpush.msra.mxu0 %v120
    %168 = vmatpush.msra.mxu0 %v119
    %169 = vmatpush.msra.mxu0 %v118
    %170 = vmatmul.f32.gmra.mxu0 %v114
    %v171 = vpop.f32.mrf.mxu0
    %v172 = vadd.f32 %v152, %v171
    %173 = vmatmul.f32.gmra.mxu0 %v116
    %v174 = vpop.f32.mrf.mxu0
    %v175 = vadd.f32 %v152, %v174
    %176 = vdwg.mxu0
    %177 = vmatpush.msra.mxu0 %v149
    %178 = vmatpush.msra.mxu0 %v148
    %179 = vmatpush.msra.mxu0 %v147
    %180 = vmatpush.msra.mxu0 %v146
    %181 = vmatpush.msra.mxu0 %v145
    %182 = vmatpush.msra.mxu0 %v144
    %183 = vmatpush.msra.mxu0 %v143
    %184 = vmatpush.msra.mxu0 %v142
    %185 = vmatpush.msra.mxu0 %v141
    %186 = vmatpush.msra.mxu0 %v140
    %187 = vmatpush.msra.mxu0 %v139
    %188 = vmatpush.msra.mxu0 %v138
    %189 = vmatpush.msra.mxu0 %v137
    %190 = vmatpush.msra.mxu0 %v136
    %191 = vmatpush.msra.mxu0 %v135
    %192 = vmatpush.msra.mxu0 %v134
    %193 = vmatmul.f32.gmra.mxu0 %v115
    %v194 = vpop.f32.mrf.mxu0
    %v195 = vadd.f32 %v172, %v194
    %196 = vmatmul.f32.gmra.mxu0 %v117
    %v197 = vpop.f32.mrf.mxu0
    %v198 = vadd.f32 %v175, %v197
    %199 = vdwg.mxu0
    %vm200 = vcmp.gt.f32.partialorder %v195, 0.0
    %vm201 = vcmp.gt.f32.partialorder %v198, 0.0
    %v202 = vmul.f32 %v195, 0.01
    %v203 = vmul.f32 %v198, 0.01
    %v204 = vsel %vm200, %v195, %v202
    %v205 = vsel %vm201, %v198, %v203
    %vm206 = vcmask 654336
    %207 = vst.msk [vmem:[#allocation2] sm:$0xff] %vm206, %v204
    %208 = vst.msk [vmem:[#allocation2 + $0x8] sm:$0xff] %vm206, %v205
    // Predicated region
    $region22: #{tpu_custom_call.1} parent=1 // pred_check
      _
    $region23: #{tpu_custom_call.1} parent=1 // pred_check_branch
      %210 = sbr.rel (0) target = $region25
    $region24: #{tpu_custom_call.1} parent=1 // pred_region
      %212 = vsyncadd [#allocation3], 0
      %s213 = sshll.u32 [#allocation2], 4
      %s214 = int_to_ptr.vmem [resolvable:$true] %s213
      %s215 = sshll.u32 %s5, 4
      %s216 = int_to_ptr.hbm [resolvable:$true] %s215
      %221 = dma.vmem_to_hbm [thread:$0]  %s214, 256, %s216, [#allocation3], 128, 128, 8
    $region25: #{tpu_custom_call.1} parent=1 // pred_fallthru
      _
    // Predicated region
    $region26: #{tpu_custom_call.1} parent=1 // pred_check
      _
    $region27: #{tpu_custom_call.1} parent=1 // pred_check_branch
      %223 = sbr.rel (0) target = $region29
    $region28: #{tpu_custom_call.1} parent=1 // pred_region
      %225 = dma.done [#allocation3], 256
    $region29: #{tpu_custom_call.1} parent=1 // pred_fallthru
      _
    %226 = vsyncpa [#allocation3], 1

</llo_original>
